<compile_context>
chip_gen: v7x
topology: tpu7x:2x2x1
jax: 0.10.0
libtpu: 0.0.40
codegen_flags: <defaults>
</compile_context>

<pallas_src>
import math

import jax
import jax.numpy as jnp
from jax import lax
from jax.experimental import pallas as pl
from jax.experimental.pallas import tpu as pltpu


def _round_up(x, m):
    return (x + m - 1) // m * m


def pos_encoding_kernel(idx_ref, hidden_ref, pe_ref, out_ref):
    # idx_ref:    (TM, 1)  int32   -- position index per flattened row
    # hidden_ref: (TM, Dp) float32 -- row tile of flattened hidden
    # pe_ref:     (Cp, Dp) float32 -- full (padded) sin/cos table, grid-resident
    # out_ref:    (TM, Dp) float32
    tm = idx_ref.shape[0]
    cp = pe_ref.shape[0]
    idx = idx_ref[...]                                                     # (TM, 1)
    # Exact row-gather expressed as one-hot @ table on the MXU.
    # (Out-of-range indices silently produce zero rows, like an identity add.)
    onehot = (idx == lax.broadcasted_iota(jnp.int32, (tm, cp), 1)).astype(jnp.float32)
    pes = jnp.dot(onehot, pe_ref[...], preferred_element_type=jnp.float32)  # (TM, Dp)
    out_ref[...] = hidden_ref[...] + pes


def positional_encoding_pallas(hidden, pe, seq_pos):
    """hidden: (B,S,D) f32, pe: (max_len, D) f32, seq_pos: (B,S) int -> (B,S,D) f32."""
    B, S, D = hidden.shape
    C = pe.shape[0]
    N = B * S

    Dp = _round_up(D, 128)                    # lane-dense output slab
    Cp = _round_up(C, 128)                    # aligned table DMA / full contraction dim
    TM = 256 if N >= 256 else _round_up(N, 8)  # big row tiles, multiple of 8 sublanes
    Np = _round_up(N, TM)

    # Zero padding keeps the one-hot matmul exact (0 * 0 contributions only).
    hidden_p = jnp.zeros((Np, Dp), hidden.dtype).at[:N, :D].set(hidden.reshape(N, D))
    pe_p = jnp.zeros((Cp, Dp), pe.dtype).at[:C, :D].set(pe)
    idx_p = jnp.zeros((Np, 1), jnp.int32).at[:N, 0].set(
        seq_pos.astype(jnp.int32).reshape(N))

    cost = pl.CostEstimate(
        flops=2 * Np * Cp * Dp,
        transcendentals=0,
        bytes_accessed=(2 * Np * Dp + Cp * Dp + Np) * 4,
    )

    out_p = pl.pallas_call(
        pos_encoding_kernel,
        out_shape=jax.ShapeDtypeStruct((Np, Dp), hidden.dtype),
        grid=(Np // TM,),
        in_specs=[
            pl.BlockSpec((TM, 1), lambda i: (i, 0)),     # row tile of indices
            pl.BlockSpec((TM, Dp), lambda i: (i, 0)),    # row tile of hidden
            pl.BlockSpec((Cp, Dp), lambda i: (0, 0)),    # constant full table
        ],
        out_specs=pl.BlockSpec((TM, Dp), lambda i: (i, 0)),
        input_output_aliases={1: 0},                     # in-place add over padded hidden
        compiler_params=pltpu.CompilerParams(dimension_semantics=("parallel",)),
        cost_estimate=cost,
    )(idx_p, hidden_p, pe_p)

    return out_p[:N, :D].reshape(B, S, D)


def make_pe_table(max_len, d_model):
    """Mirrors the torch buffer init: interleaved sin/cos rows, shape (max_len, d_model)."""
    position = jnp.arange(max_len, dtype=jnp.float32)[:, None]
    div_term = jnp.exp(jnp.arange(0, d_model, 2, dtype=jnp.float32)
                       * (-math.log(10000.0) / d_model))
    pe = jnp.zeros((max_len, d_model), jnp.float32)
    pe = pe.at[:, 0::2].set(jnp.sin(position * div_term))
    pe = pe.at[:, 1::2].set(jnp.cos(position * div_term))
    return pe


def positional_encoding_forward(hidden, pe, seq_pos):
    # TODO(synk): nn.Dropout(p=0.1) train-mode random mask omitted; forward is eval-mode (identity).
    return positional_encoding_pallas(hidden, pe, seq_pos)


if __name__ == "__main__":
    embed_dim = 32
    max_len = 1000
    B, S = 2, 8

    key = jax.random.PRNGKey(0)
    k_hidden, k_pos = jax.random.split(key)

    pe = make_pe_table(max_len, embed_dim)
    hidden = jax.random.normal(k_hidden, (B, S, embed_dim), dtype=jnp.float32)
    seq_pos = jax.random.randint(k_pos, (B, S), 0, max_len, dtype=jnp.int32)

    out = positional_encoding_forward(hidden, pe, seq_pos)
    out = jax.block_until_ready(out)

    # Pure-JAX reference of the same forward.
    ref = hidden + pe[seq_pos]
    assert out.shape == (B, S, embed_dim)
    assert jnp.allclose(out, ref, atol=1e-5, rtol=1e-5), "mismatch vs reference"

    print("KERNEL_OK")
</pallas_src>

<mosaic_0001>
module attributes {stable_mosaic.version = 11 : i64} {
  func.func @pos_encoding_kernel(%arg0: i32, %arg1: memref<16x1xi32, #tpu.memory_space<vmem>>, %arg2: memref<16x128xf32, #tpu.memory_space<vmem>>, %arg3: memref<1024x128xf32, #tpu.memory_space<vmem>>, %arg4: memref<16x128xf32, #tpu.memory_space<vmem>>) attributes {dimension_semantics = [#tpu.dimension_semantics<parallel>], iteration_bounds = array<i64: 1>, scalar_prefetch = 0 : i64, scratch_operands = 0 : i64, tpu.core_type = #tpu.core_type<tc>, window_params = [{transform_indices = @transform_0, window_bounds = array<i64: 16, 1>}, {transform_indices = @transform_1, window_bounds = array<i64: 16, 128>}, {pipeline_mode = #tpu.pipeline_mode<synchronous>, transform_indices = @transform_2, window_bounds = array<i64: 1024, 128>}, {transform_indices = @transform_3, window_bounds = array<i64: 16, 128>}]} {
    %c0 = arith.constant 0 : index
    %c0_0 = arith.constant 0 : index
    %0 = vector.load %arg1[%c0, %c0_0] : memref<16x1xi32, #tpu.memory_space<vmem>>, vector<16x1xi32>
    %1 = tpu.iota {dimensions = array<i32: 1>} : vector<16x1024xi32>
    %2 = vector.broadcast %0 : vector<16x1xi32> to vector<16x1024xi32>
    %3 = arith.cmpi eq, %2, %1 : vector<16x1024xi32>
    %4 = arith.extui %3 : vector<16x1024xi1> to vector<16x1024xi32>
    %5 = arith.sitofp %4 : vector<16x1024xi32> to vector<16x1024xf32>
    %c0_1 = arith.constant 0 : index
    %c0_2 = arith.constant 0 : index
    %6 = vector.load %arg3[%c0_1, %c0_2] : memref<1024x128xf32, #tpu.memory_space<vmem>>, vector<1024x128xf32>
    %cst = arith.constant dense<0.000000e+00> : vector<16x128xf32>
    %7 = tpu.matmul %5, %6, %cst {dimension_numbers = #tpu.dot_dimension_numbers<[1], [0], [0], [1], [0, 0, 1, 1], [], []>} : vector<16x1024xf32>, vector<1024x128xf32>, vector<16x128xf32> -> vector<16x128xf32>
    %c0_3 = arith.constant 0 : index
    %c0_4 = arith.constant 0 : index
    %8 = vector.load %arg2[%c0_3, %c0_4] : memref<16x128xf32, #tpu.memory_space<vmem>>, vector<16x128xf32>
    %9 = arith.addf %8, %7 : vector<16x128xf32>
    %c0_5 = arith.constant 0 : index
    %c0_6 = arith.constant 0 : index
    %10 = vector.load %arg4[%c0_5, %c0_6] : memref<16x128xf32, #tpu.memory_space<vmem>>, vector<16x128xf32>
    tpu.vector_store %arg4[%c0_5, %c0_6], %9 {strides = array<i32>} : memref<16x128xf32, #tpu.memory_space<vmem>>, vector<16x128xf32>,
    return
  }
  func.func @transform_0(%arg0: i32) -> (i32, i32) {
    %c0_i32 = arith.constant 0 : i32
    %c0_i32_0 = arith.constant 0 : i32
    return %arg0, %c0_i32 : i32, i32
  }
  func.func @transform_1(%arg0: i32) -> (i32, i32) {
    %c0_i32 = arith.constant 0 : i32
    %c0_i32_0 = arith.constant 0 : i32
    return %arg0, %c0_i32 : i32, i32
  }
  func.func @transform_2(%arg0: i32) -> (i32, i32) {
    %c0_i32 = arith.constant 0 : i32
    %c0_i32_0 = arith.constant 0 : i32
    %c0_i32_1 = arith.constant 0 : i32
    return %c0_i32, %c0_i32_0 : i32, i32
  }
  func.func @transform_3(%arg0: i32) -> (i32, i32) {
    %c0_i32 = arith.constant 0 : i32
    %c0_i32_0 = arith.constant 0 : i32
    return %arg0, %c0_i32 : i32, i32
  }
}

</mosaic_0001>

<llo_original>
// kernel: tpu_custom_call.1
$region0: #{tpu_custom_call.1}
  #allocation0 [shape = 'u32[]', space=smem, size = 0x4, offset = 0x4, fixed_abs, tag = 'smem constant byte address 0x4 - core index']
  #allocation1 [shape = 'u32[144,128]{1,0:T(1,128)}', space=vmem, size = 0x12000, scoped, tag = 'internal scratch']
  %s0 = inlined_call_operand.vmem [shape: s32[16,1], index: 0, kind: input, shape index: {}]
  %s1 = inlined_call_operand.hbm [shape: f32[16,128], index: 1, kind: input, shape index: {}, may-alias: {1,3}]
  %s2 = inlined_call_operand.hbm [shape: f32[1024,128], index: 2, kind: input, shape index: {}]
  %s3 = inlined_call_operand.hbm [shape: f32[16,128], index: 3, kind: output, shape index: {}, may-alias: {1,3}]
  %s4 = sld [smem:[#allocation0]]
  $region30: #{tpu_custom_call.1} parent=0
    _
  %s6 = ssub.s32 1, %s4
  %s7 = scalar_select 0, %s6, %s4
  $region1: #{tpu_custom_call.1} parent=0
    #allocation2 [shape = 'u8[8192]{0}', space=vmem, size = 0x2000, scoped, tag = 'input window, operand 1, single buffered']
    #allocation3 [shape = 's32[1]{0}', space=sflag, size = 0x4, scoped, tag = 'scoped memory for tpu_custom_call.1']
    #allocation4 [shape = 's32[1]{0}', space=sflag, size = 0x4, scoped, tag = 'scoped memory for tpu_custom_call.1']
    #allocation5 [shape = 'u8[524288]{0}', space=vmem, size = 0x80000, scoped, tag = 'input window, operand 2, single buffered']
    #allocation6 [shape = 's32[1]{0}', space=sflag, size = 0x4, scoped, tag = 'scoped memory for tpu_custom_call.1']
    #allocation7 [shape = 'u8[8192]{0}', space=vmem, size = 0x2000, scoped, tag = 'output window, operand 0, single buffered']
    %8 = vsyncpa [#allocation3], 0
    %9 = vsyncpa [#allocation6], 0
    %10 = vsyncpa [#allocation4], 0
    // Predicated region
    $region2: #{tpu_custom_call.1} parent=1 // pred_check
      _
    $region3: #{tpu_custom_call.1} parent=1 // pred_check_branch
      %12 = sbr.rel (0) target = $region5
    $region4: #{tpu_custom_call.1} parent=1 // pred_region
      _
    $region5: #{tpu_custom_call.1} parent=1 // pred_fallthru
      _
    // Predicated region
    $region6: #{tpu_custom_call.1} parent=1 // pred_check
      _
    $region7: #{tpu_custom_call.1} parent=1 // pred_check_branch
      %14 = sbr.rel (0) target = $region9
    $region8: #{tpu_custom_call.1} parent=1 // pred_region
      %s16 = ssub.s32 256, 256
      %17 = vsyncadd [#allocation3], %s16
      %s18 = sshll.u32 [#allocation2], 4
      %s19 = int_to_ptr.vmem [resolvable:$true] %s18
      %24 = dma.hbm_to_vmem [thread:$0]  %s1, 256, %s19, [#allocation3], 128, 128, 8
    $region9: #{tpu_custom_call.1} parent=1 // pred_fallthru
      _
    // Predicated region
    $region10: #{tpu_custom_call.1} parent=1 // pred_check
      _
    $region11: #{tpu_custom_call.1} parent=1 // pred_check_branch
      %26 = sbr.rel (0) target = $region13
    $region12: #{tpu_custom_call.1} parent=1 // pred_region
      %s28 = ssub.s32 16384, 16384
      %29 = vsyncadd [#allocation6], %s28
      %s30 = sshll.u32 [#allocation5], 4
      %s31 = int_to_ptr.vmem [resolvable:$true] %s30
      %36 = dma.hbm_to_vmem [thread:$0]  %s2, 16384, %s31, [#allocation6], 128, 128, 8
    $region13: #{tpu_custom_call.1} parent=1 // pred_fallthru
      _
    // Predicated region
    $region14: #{tpu_custom_call.1} parent=1 // pred_check
      _
    $region15: #{tpu_custom_call.1} parent=1 // pred_check_branch
      %38 = sbr.rel (0) target = $region17
    $region16: #{tpu_custom_call.1} parent=1 // pred_region
      %39 = dma.done [#allocation3], 256
    $region17: #{tpu_custom_call.1} parent=1 // pred_fallthru
      _
    // Predicated region
    $region18: #{tpu_custom_call.1} parent=1 // pred_check
      _
    $region19: #{tpu_custom_call.1} parent=1 // pred_check_branch
      %41 = sbr.rel (0) target = $region21
    $region20: #{tpu_custom_call.1} parent=1 // pred_region
      %42 = dma.done [#allocation6], 16384
    $region21: #{tpu_custom_call.1} parent=1 // pred_fallthru
      _
    %v43 = vld [vmem:[%s0] sm:$0xff]
    %v44 = vld [vmem:[%s0 + $0x8] sm:$0xff]
    %v45 = vlaneseq
    %v46 = vand.u32 %v45, 127
    %v47 = vadd.s32 %v46, 128
    %v48 = vadd.s32 %v46, 256
    %v49 = vadd.s32 %v46, 384
    %v50 = vadd.s32 %v46, 512
    %v51 = vadd.s32 %v46, 640
    %v52 = vadd.s32 %v46, 768
    %v53 = vadd.s32 %v46, 896
    %54 = vset.pattern.permute.xlu0 0
    %55 = vperm.xlu0 %54, %v43
    %v56 = vpop.permute.xlu0 %55
    %57 = vset.pattern.permute.xlu0 0
    %58 = vperm.xlu0 %57, %v44
    %v59 = vpop.permute.xlu0 %58
    %vm60 = vcmp.eq.s32.totalorder %v56, %v46
    %vm61 = vcmp.eq.s32.totalorder %v56, %v47
    %vm62 = vcmp.eq.s32.totalorder %v56, %v48
    %vm63 = vcmp.eq.s32.totalorder %v56, %v49
    %vm64 = vcmp.eq.s32.totalorder %v56, %v50
    %vm65 = vcmp.eq.s32.totalorder %v56, %v51
    %vm66 = vcmp.eq.s32.totalorder %v56, %v52
    %vm67 = vcmp.eq.s32.totalorder %v56, %v53
    %vm68 = vcmp.eq.s32.totalorder %v59, %v46
    %vm69 = vcmp.eq.s32.totalorder %v59, %v47
    %vm70 = vcmp.eq.s32.totalorder %v59, %v48
    %vm71 = vcmp.eq.s32.totalorder %v59, %v49
    %vm72 = vcmp.eq.s32.totalorder %v59, %v50
    %vm73 = vcmp.eq.s32.totalorder %v59, %v51
    %vm74 = vcmp.eq.s32.totalorder %v59, %v52
    %vm75 = vcmp.eq.s32.totalorder %v59, %v53
    %v76 = vsel %vm60, 1, 0
    %v77 = vsel %vm61, 1, 0
    %v78 = vsel %vm62, 1, 0
    %v79 = vsel %vm63, 1, 0
    %v80 = vsel %vm64, 1, 0
    %v81 = vsel %vm65, 1, 0
    %v82 = vsel %vm66, 1, 0
    %v83 = vsel %vm67, 1, 0
    %v84 = vsel %vm68, 1, 0
    %v85 = vsel %vm69, 1, 0
    %v86 = vsel %vm70, 1, 0
    %v87 = vsel %vm71, 1, 0
    %v88 = vsel %vm72, 1, 0
    %v89 = vsel %vm73, 1, 0
    %v90 = vsel %vm74, 1, 0
    %v91 = vsel %vm75, 1, 0
    %v92 = vcvt.s32.f32 %v76
    %v93 = vcvt.s32.f32 %v77
    %v94 = vcvt.s32.f32 %v78
    %v95 = vcvt.s32.f32 %v79
    %v96 = vcvt.s32.f32 %v80
    %v97 = vcvt.s32.f32 %v81
    %v98 = vcvt.s32.f32 %v82
    %v99 = vcvt.s32.f32 %v83
    %v100 = vcvt.s32.f32 %v84
    %v101 = vcvt.s32.f32 %v85
    %v102 = vcvt.s32.f32 %v86
    %v103 = vcvt.s32.f32 %v87
    %v104 = vcvt.s32.f32 %v88
    %v105 = vcvt.s32.f32 %v89
    %v106 = vcvt.s32.f32 %v90
    %v107 = vcvt.s32.f32 %v91
    %v108 = vld [vmem:[#allocation5] sm:$0xff]
    %v109 = vld [vmem:[#allocation5 + $0x8] sm:$0xff]
    %v110 = vld [vmem:[#allocation5 + $0x10] sm:$0xff]
    %v111 = vld [vmem:[#allocation5 + $0x18] sm:$0xff]
    %v112 = vld [vmem:[#allocation5 + $0x20] sm:$0xff]
    %v113 = vld [vmem:[#allocation5 + $0x28] sm:$0xff]
    %v114 = vld [vmem:[#allocation5 + $0x30] sm:$0xff]
    %v115 = vld [vmem:[#allocation5 + $0x38] sm:$0xff]
    %v116 = vld [vmem:[#allocation5 + $0x40] sm:$0xff]
    %v117 = vld [vmem:[#allocation5 + $0x48] sm:$0xff]
    %v118 = vld [vmem:[#allocation5 + $0x50] sm:$0xff]
    %v119 = vld [vmem:[#allocation5 + $0x58] sm:$0xff]
    %v120 = vld [vmem:[#allocation5 + $0x60] sm:$0xff]
    %v121 = vld [vmem:[#allocation5 + $0x68] sm:$0xff]
    %v122 = vld [vmem:[#allocation5 + $0x70] sm:$0xff]
    %v123 = vld [vmem:[#allocation5 + $0x78] sm:$0xff]
    %v124 = vld [vmem:[#allocation5 + $0x80] sm:$0xff]
    %v125 = vld [vmem:[#allocation5 + $0x88] sm:$0xff]
    %v126 = vld [vmem:[#allocation5 + $0x90] sm:$0xff]
    %v127 = vld [vmem:[#allocation5 + $0x98] sm:$0xff]
    %v128 = vld [vmem:[#allocation5 + $0xa0] sm:$0xff]
    %v129 = vld [vmem:[#allocation5 + $0xa8] sm:$0xff]
    %v130 = vld [vmem:[#allocation5 + $0xb0] sm:$0xff]
    %v131 = vld [vmem:[#allocation5 + $0xb8] sm:$0xff]
    %v132 = vld [vmem:[#allocation5 + $0xc0] sm:$0xff]
    %v133 = vld [vmem:[#allocation5 + $0xc8] sm:$0xff]
    %v134 = vld [vmem:[#allocation5 + $0xd0] sm:$0xff]
    %v135 = vld [vmem:[#allocation5 + $0xd8] sm:$0xff]
    %v136 = vld [vmem:[#allocation5 + $0xe0] sm:$0xff]
    %v137 = vld [vmem:[#allocation5 + $0xe8] sm:$0xff]
    %v138 = vld [vmem:[#allocation5 + $0xf0] sm:$0xff]
    %v139 = vld [vmem:[#allocation5 + $0xf8] sm:$0xff]
    %v140 = vld [vmem:[#allocation5 + $0x100] sm:$0xff]
    %v141 = vld [vmem:[#allocation5 + $0x108] sm:$0xff]
    %v142 = vld [vmem:[#allocation5 + $0x110] sm:$0xff]
    %v143 = vld [vmem:[#allocation5 + $0x118] sm:$0xff]
    %v144 = vld [vmem:[#allocation5 + $0x120] sm:$0xff]
    %v145 = vld [vmem:[#allocation5 + $0x128] sm:$0xff]
    %v146 = vld [vmem:[#allocation5 + $0x130] sm:$0xff]
    %v147 = vld [vmem:[#allocation5 + $0x138] sm:$0xff]
    %v148 = vld [vmem:[#allocation5 + $0x140] sm:$0xff]
    %v149 = vld [vmem:[#allocation5 + $0x148] sm:$0xff]
    %v150 = vld [vmem:[#allocation5 + $0x150] sm:$0xff]
    %v151 = vld [vmem:[#allocation5 + $0x158] sm:$0xff]
    %v152 = vld [vmem:[#allocation5 + $0x160] sm:$0xff]
    %v153 = vld [vmem:[#allocation5 + $0x168] sm:$0xff]
    %v154 = vld [vmem:[#allocation5 + $0x170] sm:$0xff]
    %v155 = vld [vmem:[#allocation5 + $0x178] sm:$0xff]
    %v156 = vld [vmem:[#allocation5 + $0x180] sm:$0xff]
    %v157 = vld [vmem:[#allocation5 + $0x188] sm:$0xff]
    %v158 = vld [vmem:[#allocation5 + $0x190] sm:$0xff]
    %v159 = vld [vmem:[#allocation5 + $0x198] sm:$0xff]
    %v160 = vld [vmem:[#allocation5 + $0x1a0] sm:$0xff]
    %v161 = vld [vmem:[#allocation5 + $0x1a8] sm:$0xff]
    %v162 = vld [vmem:[#allocation5 + $0x1b0] sm:$0xff]
    %v163 = vld [vmem:[#allocation5 + $0x1b8] sm:$0xff]
    %v164 = vld [vmem:[#allocation5 + $0x1c0] sm:$0xff]
    %v165 = vld [vmem:[#allocation5 + $0x1c8] sm:$0xff]
    %v166 = vld [vmem:[#allocation5 + $0x1d0] sm:$0xff]
    %v167 = vld [vmem:[#allocation5 + $0x1d8] sm:$0xff]
    %v168 = vld [vmem:[#allocation5 + $0x1e0] sm:$0xff]
    %v169 = vld [vmem:[#allocation5 + $0x1e8] sm:$0xff]
    %v170 = vld [vmem:[#allocation5 + $0x1f0] sm:$0xff]
    %v171 = vld [vmem:[#allocation5 + $0x1f8] sm:$0xff]
    %v172 = vld [vmem:[#allocation5 + $0x200] sm:$0xff]
    %v173 = vld [vmem:[#allocation5 + $0x208] sm:$0xff]
    %v174 = vld [vmem:[#allocation5 + $0x210] sm:$0xff]
    %v175 = vld [vmem:[#allocation5 + $0x218] sm:$0xff]
    %v176 = vld [vmem:[#allocation5 + $0x220] sm:$0xff]
    %v177 = vld [vmem:[#allocation5 + $0x228] sm:$0xff]
    %v178 = vld [vmem:[#allocation5 + $0x230] sm:$0xff]
    %v179 = vld [vmem:[#allocation5 + $0x238] sm:$0xff]
    %v180 = vld [vmem:[#allocation5 + $0x240] sm:$0xff]
    %v181 = vld [vmem:[#allocation5 + $0x248] sm:$0xff]
    %v182 = vld [vmem:[#allocation5 + $0x250] sm:$0xff]
    %v183 = vld [vmem:[#allocation5 + $0x258] sm:$0xff]
    %v184 = vld [vmem:[#allocation5 + $0x260] sm:$0xff]
    %v185 = vld [vmem:[#allocation5 + $0x268] sm:$0xff]
    %v186 = vld [vmem:[#allocation5 + $0x270] sm:$0xff]
    %v187 = vld [vmem:[#allocation5 + $0x278] sm:$0xff]
    %v188 = vld [vmem:[#allocation5 + $0x280] sm:$0xff]
    %v189 = vld [vmem:[#allocation5 + $0x288] sm:$0xff]
    %v190 = vld [vmem:[#allocation5 + $0x290] sm:$0xff]
    %v191 = vld [vmem:[#allocation5 + $0x298] sm:$0xff]
    %v192 = vld [vmem:[#allocation5 + $0x2a0] sm:$0xff]
    %v193 = vld [vmem:[#allocation5 + $0x2a8] sm:$0xff]
    %v194 = vld [vmem:[#allocation5 + $0x2b0] sm:$0xff]
    %v195 = vld [vmem:[#allocation5 + $0x2b8] sm:$0xff]
    %v196 = vld [vmem:[#allocation5 + $0x2c0] sm:$0xff]
    %v197 = vld [vmem:[#allocation5 + $0x2c8] sm:$0xff]
    %v198 = vld [vmem:[#allocation5 + $0x2d0] sm:$0xff]
    %v199 = vld [vmem:[#allocation5 + $0x2d8] sm:$0xff]
    %v200 = vld [vmem:[#allocation5 + $0x2e0] sm:$0xff]
    %v201 = vld [vmem:[#allocation5 + $0x2e8] sm:$0xff]
    %v202 = vld [vmem:[#allocation5 + $0x2f0] sm:$0xff]
    %v203 = vld [vmem:[#allocation5 + $0x2f8] sm:$0xff]
    %v204 = vld [vmem:[#allocation5 + $0x300] sm:$0xff]
    %v205 = vld [vmem:[#allocation5 + $0x308] sm:$0xff]
    %v206 = vld [vmem:[#allocation5 + $0x310] sm:$0xff]
    %v207 = vld [vmem:[#allocation5 + $0x318] sm:$0xff]
    %v208 = vld [vmem:[#allocation5 + $0x320] sm:$0xff]
    %v209 = vld [vmem:[#allocation5 + $0x328] sm:$0xff]
    %v210 = vld [vmem:[#allocation5 + $0x330] sm:$0xff]
    %v211 = vld [vmem:[#allocation5 + $0x338] sm:$0xff]
    %v212 = vld [vmem:[#allocation5 + $0x340] sm:$0xff]
    %v213 = vld [vmem:[#allocation5 + $0x348] sm:$0xff]
    %v214 = vld [vmem:[#allocation5 + $0x350] sm:$0xff]
    %v215 = vld [vmem:[#allocation5 + $0x358] sm:$0xff]
    %v216 = vld [vmem:[#allocation5 + $0x360] sm:$0xff]
    %v217 = vld [vmem:[#allocation5 + $0x368] sm:$0xff]
    %v218 = vld [vmem:[#allocation5 + $0x370] sm:$0xff]
    %v219 = vld [vmem:[#allocation5 + $0x378] sm:$0xff]
    %v220 = vld [vmem:[#allocation5 + $0x380] sm:$0xff]
    %v221 = vld [vmem:[#allocation5 + $0x388] sm:$0xff]
    %v222 = vld [vmem:[#allocation5 + $0x390] sm:$0xff]
    %v223 = vld [vmem:[#allocation5 + $0x398] sm:$0xff]
    %v224 = vld [vmem:[#allocation5 + $0x3a0] sm:$0xff]
    %v225 = vld [vmem:[#allocation5 + $0x3a8] sm:$0xff]
    %v226 = vld [vmem:[#allocation5 + $0x3b0] sm:$0xff]
    %v227 = vld [vmem:[#allocation5 + $0x3b8] sm:$0xff]
    %v228 = vld [vmem:[#allocation5 + $0x3c0] sm:$0xff]
    %v229 = vld [vmem:[#allocation5 + $0x3c8] sm:$0xff]
    %v230 = vld [vmem:[#allocation5 + $0x3d0] sm:$0xff]
    %v231 = vld [vmem:[#allocation5 + $0x3d8] sm:$0xff]
    %v232 = vld [vmem:[#allocation5 + $0x3e0] sm:$0xff]
    %v233 = vld [vmem:[#allocation5 + $0x3e8] sm:$0xff]
    %v234 = vld [vmem:[#allocation5 + $0x3f0] sm:$0xff]
    %v235 = vld [vmem:[#allocation5 + $0x3f8] sm:$0xff]
    %236 = vmatprep.subr.mxu0 0.0
    %237 = vmatpush1.msra.mxu0 %v108
    %238 = vmatprep.subr.mxu0 0.0
    %239 = vmatpush1.msra.mxu0 %v109
    %240 = vmatprep.subr.mxu0 0.0
    %241 = vmatpush1.msra.mxu0 %v110
    %242 = vmatprep.subr.mxu0 0.0
    %243 = vmatpush1.msra.mxu0 %v111
    %244 = vmatprep.subr.mxu0 0.0
    %245 = vmatpush1.msra.mxu0 %v112
    %246 = vmatprep.subr.mxu0 0.0
    %247 = vmatpush1.msra.mxu0 %v113
    %248 = vmatprep.subr.mxu0 0.0
    %249 = vmatpush1.msra.mxu0 %v114
    %250 = vmatprep.subr.mxu0 0.0
    %251 = vmatpush1.msra.mxu0 %v115
    %252 = vmatprep.subr.mxu0 0.0
    %253 = vmatpush1.msra.mxu0 %v116
    %254 = vmatprep.subr.mxu0 0.0
    %255 = vmatpush1.msra.mxu0 %v117
    %256 = vmatprep.subr.mxu0 0.0
    %257 = vmatpush1.msra.mxu0 %v118
    %258 = vmatprep.subr.mxu0 0.0
    %259 = vmatpush1.msra.mxu0 %v119
    %260 = vmatprep.subr.mxu0 0.0
    %261 = vmatpush1.msra.mxu0 %v120
    %262 = vmatprep.subr.mxu0 0.0
    %263 = vmatpush1.msra.mxu0 %v121
    %264 = vmatprep.subr.mxu0 0.0
    %265 = vmatpush1.msra.mxu0 %v122
    %266 = vmatprep.subr.mxu0 0.0
    %267 = vmatpush1.msra.mxu0 %v123
    %268 = vmatprep.subr.mxu0 0.0
    %269 = vmatpush1.msra.mxu0 %v124
    %270 = vmatprep.subr.mxu0 0.0
    %271 = vmatpush1.msra.mxu0 %v125
    %272 = vmatprep.subr.mxu0 0.0
    %273 = vmatpush1.msra.mxu0 %v126
    %274 = vmatprep.subr.mxu0 0.0
    %275 = vmatpush1.msra.mxu0 %v127
    %276 = vmatprep.subr.mxu0 0.0
    %277 = vmatpush1.msra.mxu0 %v128
    %278 = vmatprep.subr.mxu0 0.0
    %279 = vmatpush1.msra.mxu0 %v129
    %280 = vmatprep.subr.mxu0 0.0
    %281 = vmatpush1.msra.mxu0 %v130
    %282 = vmatprep.subr.mxu0 0.0
    %283 = vmatpush1.msra.mxu0 %v131
    %284 = vmatprep.subr.mxu0 0.0
    %285 = vmatpush1.msra.mxu0 %v132
    %286 = vmatprep.subr.mxu0 0.0
    %287 = vmatpush1.msra.mxu0 %v133
    %288 = vmatprep.subr.mxu0 0.0
    %289 = vmatpush1.msra.mxu0 %v134
    %290 = vmatprep.subr.mxu0 0.0
    %291 = vmatpush1.msra.mxu0 %v135
    %292 = vmatprep.subr.mxu0 0.0
    %293 = vmatpush1.msra.mxu0 %v136
    %294 = vmatprep.subr.mxu0 0.0
    %295 = vmatpush1.msra.mxu0 %v137
    %296 = vmatprep.subr.mxu0 0.0
    %297 = vmatpush1.msra.mxu0 %v138
    %298 = vmatprep.subr.mxu0 0.0
    %299 = vmatpush1.msra.mxu0 %v139
    %300 = vmatprep.mubr.f32.mxu0 %v93
    %301 = vmatmul.mubr.f32.gmra.mrb[0].mxu0 %v92
    %v302 = vpop.f32.mrb[0].mxu0
    %v303 = vadd.f32 0.0, %v302
    %v304 = vpop.f32.mrb[0].mxu0
    %305 = vmatprep.mubr.f32.mxu0 %v101
    %306 = vmatmul.mubr.f32.gmra.mrb[0].mxu0 %v100
    %v307 = vpop.f32.mrb[0].mxu0
    %v308 = vadd.f32 0.0, %v307
    %v309 = vpop.f32.mrb[0].mxu0
    %310 = vdwg.mxu0
    %311 = vmatprep.subr.mxu0 0.0
    %312 = vmatpush1.msra.mxu0 %v140
    %313 = vmatprep.subr.mxu0 0.0
    %314 = vmatpush1.msra.mxu0 %v141
    %315 = vmatprep.subr.mxu0 0.0
    %316 = vmatpush1.msra.mxu0 %v142
    %317 = vmatprep.subr.mxu0 0.0
    %318 = vmatpush1.msra.mxu0 %v143
    %319 = vmatprep.subr.mxu0 0.0
    %320 = vmatpush1.msra.mxu0 %v144
    %321 = vmatprep.subr.mxu0 0.0
    %322 = vmatpush1.msra.mxu0 %v145
    %323 = vmatprep.subr.mxu0 0.0
    %324 = vmatpush1.msra.mxu0 %v146
    %325 = vmatprep.subr.mxu0 0.0
    %326 = vmatpush1.msra.mxu0 %v147
    %327 = vmatprep.subr.mxu0 0.0
    %328 = vmatpush1.msra.mxu0 %v148
    %329 = vmatprep.subr.mxu0 0.0
    %330 = vmatpush1.msra.mxu0 %v149
    %331 = vmatprep.subr.mxu0 0.0
    %332 = vmatpush1.msra.mxu0 %v150
    %333 = vmatprep.subr.mxu0 0.0
    %334 = vmatpush1.msra.mxu0 %v151
    %335 = vmatprep.subr.mxu0 0.0
    %336 = vmatpush1.msra.mxu0 %v152
    %337 = vmatprep.subr.mxu0 0.0
    %338 = vmatpush1.msra.mxu0 %v153
    %339 = vmatprep.subr.mxu0 0.0
    %340 = vmatpush1.msra.mxu0 %v154
    %341 = vmatprep.subr.mxu0 0.0
    %342 = vmatpush1.msra.mxu0 %v155
    %343 = vmatprep.subr.mxu0 0.0
    %344 = vmatpush1.msra.mxu0 %v156
    %345 = vmatprep.subr.mxu0 0.0
    %346 = vmatpush1.msra.mxu0 %v157
    %347 = vmatprep.subr.mxu0 0.0
    %348 = vmatpush1.msra.mxu0 %v158
    %349 = vmatprep.subr.mxu0 0.0
    %350 = vmatpush1.msra.mxu0 %v159
    %351 = vmatprep.subr.mxu0 0.0
    %352 = vmatpush1.msra.mxu0 %v160
    %353 = vmatprep.subr.mxu0 0.0
    %354 = vmatpush1.msra.mxu0 %v161
    %355 = vmatprep.subr.mxu0 0.0
    %356 = vmatpush1.msra.mxu0 %v162
    %357 = vmatprep.subr.mxu0 0.0
    %358 = vmatpush1.msra.mxu0 %v163
    %359 = vmatprep.subr.mxu0 0.0
    %360 = vmatpush1.msra.mxu0 %v164
    %361 = vmatprep.subr.mxu0 0.0
    %362 = vmatpush1.msra.mxu0 %v165
    %363 = vmatprep.subr.mxu0 0.0
    %364 = vmatpush1.msra.mxu0 %v166
    %365 = vmatprep.subr.mxu0 0.0
    %366 = vmatpush1.msra.mxu0 %v167
    %367 = vmatprep.subr.mxu0 0.0
    %368 = vmatpush1.msra.mxu0 %v168
    %369 = vmatprep.subr.mxu0 0.0
    %370 = vmatpush1.msra.mxu0 %v169
    %371 = vmatprep.subr.mxu0 0.0
    %372 = vmatpush1.msra.mxu0 %v170
    %373 = vmatprep.subr.mxu0 0.0
    %374 = vmatpush1.msra.mxu0 %v171
    %375 = vmatprep.mubr.f32.mxu0 %v95
    %376 = vmatmul.mubr.f32.gmra.mrb[0].mxu0 %v94
    %v377 = vpop.f32.mrb[0].mxu0
    %v378 = vadd.f32 %v303, %v377
    %v379 = vpop.f32.mrb[0].mxu0
    %380 = vmatprep.mubr.f32.mxu0 %v103
    %381 = vmatmul.mubr.f32.gmra.mrb[0].mxu0 %v102
    %v382 = vpop.f32.mrb[0].mxu0
    %v383 = vadd.f32 %v308, %v382
    %v384 = vpop.f32.mrb[0].mxu0
    %385 = vdwg.mxu0
    %386 = vmatprep.subr.mxu0 0.0
    %387 = vmatpush1.msra.mxu0 %v172
    %388 = vmatprep.subr.mxu0 0.0
    %389 = vmatpush1.msra.mxu0 %v173
    %390 = vmatprep.subr.mxu0 0.0
    %391 = vmatpush1.msra.mxu0 %v174
    %392 = vmatprep.subr.mxu0 0.0
    %393 = vmatpush1.msra.mxu0 %v175
    %394 = vmatprep.subr.mxu0 0.0
    %395 = vmatpush1.msra.mxu0 %v176
    %396 = vmatprep.subr.mxu0 0.0
    %397 = vmatpush1.msra.mxu0 %v177
    %398 = vmatprep.subr.mxu0 0.0
    %399 = vmatpush1.msra.mxu0 %v178
    %400 = vmatprep.subr.mxu0 0.0
    %401 = vmatpush1.msra.mxu0 %v179
    %402 = vmatprep.subr.mxu0 0.0
    %403 = vmatpush1.msra.mxu0 %v180
    %404 = vmatprep.subr.mxu0 0.0
    %405 = vmatpush1.msra.mxu0 %v181
    %406 = vmatprep.subr.mxu0 0.0
    %407 = vmatpush1.msra.mxu0 %v182
    %408 = vmatprep.subr.mxu0 0.0
    %409 = vmatpush1.msra.mxu0 %v183
    %410 = vmatprep.subr.mxu0 0.0
    %411 = vmatpush1.msra.mxu0 %v184
    %412 = vmatprep.subr.mxu0 0.0
    %413 = vmatpush1.msra.mxu0 %v185
    %414 = vmatprep.subr.mxu0 0.0
    %415 = vmatpush1.msra.mxu0 %v186
    %416 = vmatprep.subr.mxu0 0.0
    %417 = vmatpush1.msra.mxu0 %v187
    %418 = vmatprep.subr.mxu0 0.0
    %419 = vmatpush1.msra.mxu0 %v188
    %420 = vmatprep.subr.mxu0 0.0
    %421 = vmatpush1.msra.mxu0 %v189
    %422 = vmatprep.subr.mxu0 0.0
    %423 = vmatpush1.msra.mxu0 %v190
    %424 = vmatprep.subr.mxu0 0.0
    %425 = vmatpush1.msra.mxu0 %v191
    %426 = vmatprep.subr.mxu0 0.0
    %427 = vmatpush1.msra.mxu0 %v192
    %428 = vmatprep.subr.mxu0 0.0
    %429 = vmatpush1.msra.mxu0 %v193
    %430 = vmatprep.subr.mxu0 0.0
    %431 = vmatpush1.msra.mxu0 %v194
    %432 = vmatprep.subr.mxu0 0.0
    %433 = vmatpush1.msra.mxu0 %v195
    %434 = vmatprep.subr.mxu0 0.0
    %435 = vmatpush1.msra.mxu0 %v196
    %436 = vmatprep.subr.mxu0 0.0
    %437 = vmatpush1.msra.mxu0 %v197
    %438 = vmatprep.subr.mxu0 0.0
    %439 = vmatpush1.msra.mxu0 %v198
    %440 = vmatprep.subr.mxu0 0.0
    %441 = vmatpush1.msra.mxu0 %v199
    %442 = vmatprep.subr.mxu0 0.0
    %443 = vmatpush1.msra.mxu0 %v200
    %444 = vmatprep.subr.mxu0 0.0
    %445 = vmatpush1.msra.mxu0 %v201
    %446 = vmatprep.subr.mxu0 0.0
    %447 = vmatpush1.msra.mxu0 %v202
    %448 = vmatprep.subr.mxu0 0.0
    %449 = vmatpush1.msra.mxu0 %v203
    %450 = vmatprep.mubr.f32.mxu0 %v97
    %451 = vmatmul.mubr.f32.gmra.mrb[0].mxu0 %v96
    %v452 = vpop.f32.mrb[0].mxu0
    %v453 = vadd.f32 %v378, %v452
    %v454 = vpop.f32.mrb[0].mxu0
    %455 = vmatprep.mubr.f32.mxu0 %v105
    %456 = vmatmul.mubr.f32.gmra.mrb[0].mxu0 %v104
    %v457 = vpop.f32.mrb[0].mxu0
    %v458 = vadd.f32 %v383, %v457
    %v459 = vpop.f32.mrb[0].mxu0
    %460 = vdwg.mxu0
    %461 = vmatprep.subr.mxu0 0.0
    %462 = vmatpush1.msra.mxu0 %v204
    %463 = vmatprep.subr.mxu0 0.0
    %464 = vmatpush1.msra.mxu0 %v205
    %465 = vmatprep.subr.mxu0 0.0
    %466 = vmatpush1.msra.mxu0 %v206
    %467 = vmatprep.subr.mxu0 0.0
    %468 = vmatpush1.msra.mxu0 %v207
    %469 = vmatprep.subr.mxu0 0.0
    %470 = vmatpush1.msra.mxu0 %v208
    %471 = vmatprep.subr.mxu0 0.0
    %472 = vmatpush1.msra.mxu0 %v209
    %473 = vmatprep.subr.mxu0 0.0
    %474 = vmatpush1.msra.mxu0 %v210
    %475 = vmatprep.subr.mxu0 0.0
    %476 = vmatpush1.msra.mxu0 %v211
    %477 = vmatprep.subr.mxu0 0.0
    %478 = vmatpush1.msra.mxu0 %v212
    %479 = vmatprep.subr.mxu0 0.0
    %480 = vmatpush1.msra.mxu0 %v213
    %481 = vmatprep.subr.mxu0 0.0
    %482 = vmatpush1.msra.mxu0 %v214
    %483 = vmatprep.subr.mxu0 0.0
    %484 = vmatpush1.msra.mxu0 %v215
    %485 = vmatprep.subr.mxu0 0.0
    %486 = vmatpush1.msra.mxu0 %v216
    %487 = vmatprep.subr.mxu0 0.0
    %488 = vmatpush1.msra.mxu0 %v217
    %489 = vmatprep.subr.mxu0 0.0
    %490 = vmatpush1.msra.mxu0 %v218
    %491 = vmatprep.subr.mxu0 0.0
    %492 = vmatpush1.msra.mxu0 %v219
    %493 = vmatprep.subr.mxu0 0.0
    %494 = vmatpush1.msra.mxu0 %v220
    %495 = vmatprep.subr.mxu0 0.0
    %496 = vmatpush1.msra.mxu0 %v221
    %497 = vmatprep.subr.mxu0 0.0
    %498 = vmatpush1.msra.mxu0 %v222
    %499 = vmatprep.subr.mxu0 0.0
    %500 = vmatpush1.msra.mxu0 %v223
    %501 = vmatprep.subr.mxu0 0.0
    %502 = vmatpush1.msra.mxu0 %v224
    %503 = vmatprep.subr.mxu0 0.0
    %504 = vmatpush1.msra.mxu0 %v225
    %505 = vmatprep.subr.mxu0 0.0
    %506 = vmatpush1.msra.mxu0 %v226
    %507 = vmatprep.subr.mxu0 0.0
    %508 = vmatpush1.msra.mxu0 %v227
    %509 = vmatprep.subr.mxu0 0.0
    %510 = vmatpush1.msra.mxu0 %v228
    %511 = vmatprep.subr.mxu0 0.0
    %512 = vmatpush1.msra.mxu0 %v229
    %513 = vmatprep.subr.mxu0 0.0
    %514 = vmatpush1.msra.mxu0 %v230
    %515 = vmatprep.subr.mxu0 0.0
    %516 = vmatpush1.msra.mxu0 %v231
    %517 = vmatprep.subr.mxu0 0.0
    %518 = vmatpush1.msra.mxu0 %v232
    %519 = vmatprep.subr.mxu0 0.0
    %520 = vmatpush1.msra.mxu0 %v233
    %521 = vmatprep.subr.mxu0 0.0
    %522 = vmatpush1.msra.mxu0 %v234
    %523 = vmatprep.subr.mxu0 0.0
    %524 = vmatpush1.msra.mxu0 %v235
    %525 = vmatprep.mubr.f32.mxu0 %v99
    %526 = vmatmul.mubr.f32.gmra.mrb[0].mxu0 %v98
    %v527 = vpop.f32.mrb[0].mxu0
    %v528 = vadd.f32 %v453, %v527
    %v529 = vpop.f32.mrb[0].mxu0
    %530 = vmatprep.mubr.f32.mxu0 %v107
    %531 = vmatmul.mubr.f32.gmra.mrb[0].mxu0 %v106
    %v532 = vpop.f32.mrb[0].mxu0
    %v533 = vadd.f32 %v458, %v532
    %v534 = vpop.f32.mrb[0].mxu0
    %535 = vdwg.mxu0
    %v536 = vld [vmem:[#allocation2] sm:$0xff]
    %v537 = vld [vmem:[#allocation2 + $0x8] sm:$0xff]
    %v538 = vadd.f32 %v536, %v528
    %v539 = vadd.f32 %v537, %v533
    %540 = vst [vmem:[#allocation7] sm:$0xff] %v538
    %541 = vst [vmem:[#allocation7 + $0x8] sm:$0xff] %v539
    // Predicated region
    $region22: #{tpu_custom_call.1} parent=1 // pred_check
      _
    $region23: #{tpu_custom_call.1} parent=1 // pred_check_branch
      %543 = sbr.rel (0) target = $region25
    $region24: #{tpu_custom_call.1} parent=1 // pred_region
      %s545 = ssub.s32 256, 256
      %546 = vsyncadd [#allocation4], %s545
      %s547 = sshll.u32 [#allocation7], 4
      %s548 = int_to_ptr.vmem [resolvable:$true] %s547
      %553 = dma.vmem_to_hbm [thread:$0]  %s548, 256, %s3, [#allocation4], 128, 128, 8
    $region25: #{tpu_custom_call.1} parent=1 // pred_fallthru
      _
    // Predicated region
    $region26: #{tpu_custom_call.1} parent=1 // pred_check
      _
    $region27: #{tpu_custom_call.1} parent=1 // pred_check_branch
      %555 = sbr.rel (0) target = $region29
    $region28: #{tpu_custom_call.1} parent=1 // pred_region
      %556 = dma.done [#allocation4], 256
    $region29: #{tpu_custom_call.1} parent=1 // pred_fallthru
      _
    %557 = vsyncpa [#allocation3], 1
    %558 = vsyncpa [#allocation6], 1
    %559 = vsyncpa [#allocation4], 1

</llo_original>
